<compile_context>
chip_gen: v7x
topology: tpu7x:2x2x1
jax: 0.10.0
libtpu: 0.0.40
codegen_flags: <defaults>
</compile_context>

<pallas_src>
import functools
import math

import jax
import jax.numpy as jnp
from jax import lax
from jax.experimental import pallas as pl
from jax.experimental.pallas import tpu as pltpu

_LN_EPS = 1e-5  # torch.nn.LayerNorm default


def _round_up(n, m):
    return ((n + m - 1) // m) * m


def _vmem_sizes():
    """Generation-aware (budget, vmem_limit_bytes): 3/4 and 7/8 of physical VMEM."""
    phys = 64 * 1024 * 1024  # conservative default (v7x)
    try:
        phys = int(pltpu.get_tpu_info().vmem_capacity_bytes)
    except Exception:
        pass
    return (phys * 3) // 4, (phys * 7) // 8


def _num_tensorcores():
    """2 TensorCores per chip on v7x; 1 on v5e / v6e."""
    try:
        kind = jax.devices()[0].device_kind.lower()
    except Exception:
        return 1
    return 2 if ("v7" in kind or "tpu7" in kind) else 1


def _layernorm(x, gamma, beta, d_true):
    """LayerNorm over the last axis; stats use only the first d_true lanes
    (remaining lanes are zero padding)."""
    d_pad = x.shape[-1]
    if d_pad != d_true:
        mask = lax.broadcasted_iota(jnp.int32, x.shape, x.ndim - 1) < d_true
        mu = jnp.sum(jnp.where(mask, x, 0.0), axis=-1, keepdims=True) / d_true
        diff = jnp.where(mask, x - mu, 0.0)
        var = jnp.sum(diff * diff, axis=-1, keepdims=True) / d_true
    else:
        mu = jnp.mean(x, axis=-1, keepdims=True)
        var = jnp.mean((x - mu) ** 2, axis=-1, keepdims=True)
    return (x - mu) * lax.rsqrt(var + _LN_EPS) * gamma + beta


def _gelu(x, approximate):
    if approximate:
        # tanh approximation -> EUP (separate bundle slot); fast path, slightly
        # deviates from torch's exact erf GELU.
        return jax.nn.gelu(x, approximate=True)
    return 0.5 * x * (1.0 + lax.erf(x * (1.0 / math.sqrt(2.0))))


def _adapter_kernel(layer_norm_opt, orig_dim, gelu_approximate,
                    x_ref, wd_ref, bd_ref, wu_ref, bu_ref, g_ref, b_ref,
                    o_ref):
    x = x_ref[...]

    if layer_norm_opt == "first":
        xn = _layernorm(x.astype(jnp.float32),
                        g_ref[...].astype(jnp.float32),
                        b_ref[...].astype(jnp.float32),
                        orig_dim)
        x = xn.astype(wd_ref.dtype)          # back to MXU-native dtype
    else:
        x = x.astype(wd_ref.dtype)

    # Down projection: native-dtype MXU matmul with f32 accumulation.
    h = jnp.dot(x, wd_ref[...], preferred_element_type=jnp.float32)
    h = h + bd_ref[...].astype(jnp.float32)
    h = _gelu(h, gelu_approximate)

    # Up projection.
    y = jnp.dot(h.astype(wu_ref.dtype), wu_ref[...],
                preferred_element_type=jnp.float32)
    y = y + bu_ref[...].astype(jnp.float32)

    if layer_norm_opt == "last":
        y = _layernorm(y,
                       g_ref[...].astype(jnp.float32),
                       b_ref[...].astype(jnp.float32),
                       orig_dim)

    o_ref[...] = y.astype(o_ref.dtype)


def _pick_tm(M, d_pad, h_pad, x_itemsize, w_itemsize, out_itemsize,
             vmem_budget, num_cores):
    """Largest row tile whose double-buffered x/out tiles + single-buffered
    resident weights + f32 temporaries fit the VMEM budget."""
    # Resident operands (W_down^T, W_up^T, biases, LN gamma/beta) — single copy
    # thanks to pl.Buffered(1).
    w_bytes = w_itemsize * (2 * d_pad * h_pad + h_pad + 3 * d_pad)
    tm = 8
    for cand in (4096, 2048, 1024, 768, 512, 384, 256, 128, 64, 32, 16, 8):
        io = 2 * cand * d_pad * (x_itemsize + out_itemsize)   # dbl-buffered in/out
        tmp = 4 * cand * (h_pad + 2 * d_pad)                  # f32 temporaries
        if w_bytes + io + tmp <= vmem_budget:
            tm = cand
            break
    tm = max(8, min(tm, _round_up(M, 8)))
    # v7x only: aim for >= 4 grid steps (>= 2 per TensorCore) so each core's
    # input/output double-buffer actually overlaps DMA with compute.  On
    # v5e/v6e (single TC) keep the single largest tile.
    if num_cores >= 2 and M > 32 and -(-M // tm) < 4:
        piece = -(-M // 4)
        tm = max(8, _round_up(piece, 128) if piece >= 128 else _round_up(piece, 8))
    return tm


def _pad_2d(a, rows, cols):
    pr, pc = rows - a.shape[0], cols - a.shape[1]
    if pr or pc:
        a = jnp.pad(a, ((0, pr), (0, pc)))
    return a


def adapter_forward(x, params, layer_norm_opt=None, *, tm=None,
                    gelu_approximate=False):
    """x: (..., orig_dim). Returns the same shape and dtype as x."""
    orig_shape = x.shape
    orig_dim = x.shape[-1]
    down_dim = params["w_down_t"].shape[-1]

    # Lane padding only when not already 128-aligned (aligned case: zero
    # wrapper-side HBM traffic and a free final reshape).
    d_pad = orig_dim if orig_dim % 128 == 0 else max(128, _round_up(orig_dim, 128))
    h_pad = down_dim if down_dim % 128 == 0 else max(128, _round_up(down_dim, 128))

    x2d = x.reshape(-1, orig_dim)
    M = x2d.shape[0]

    w_dtype = params["w_down_t"].dtype
    vmem_budget, vmem_limit = _vmem_sizes()
    num_cores = _num_tensorcores()
    if tm is None:
        tm = _pick_tm(M, d_pad, h_pad,
                      jnp.dtype(x.dtype).itemsize,
                      jnp.dtype(w_dtype).itemsize,
                      jnp.dtype(x.dtype).itemsize,
                      vmem_budget, num_cores)
    else:
        tm = max(8, _round_up(tm, 8))

    # No row padding: cdiv grid; the partial last block's out-of-bounds rows
    # hold garbage, but all math is per-row and their writes are discarded.
    grid = (pl.cdiv(M, tm),)

    x_p = x2d if d_pad == orig_dim else jnp.pad(x2d, ((0, 0), (0, d_pad - orig_dim)))
    wd_p = _pad_2d(params["w_down_t"], d_pad, h_pad)
    bd_p = _pad_2d(params["b_down"], 1, h_pad)
    wu_p = _pad_2d(params["w_up_t"], h_pad, d_pad)
    bu_p = _pad_2d(params["b_up"], 1, d_pad)
    g_p = _pad_2d(params["ln_gamma"], 1, d_pad)
    b_p = _pad_2d(params["ln_beta"], 1, d_pad)

    kernel = functools.partial(_adapter_kernel, layer_norm_opt, orig_dim,
                               gelu_approximate)
    full = lambda i: (0, 0)

    def resident_spec(shape, single_buffer):
        # Constant-index operand: fetched once; single buffer halves its VMEM
        # footprint (bigger row tile).
        if single_buffer:
            return pl.BlockSpec(shape, full, pipeline_mode=pl.Buffered(1))
        return pl.BlockSpec(shape, full)

    def run(single_buffer_weights):
        return pl.pallas_call(
            kernel,
            out_shape=jax.ShapeDtypeStruct((M, d_pad), x.dtype),
            grid_spec=pltpu.PrefetchScalarGridSpec(
                num_scalar_prefetch=0,
                grid=grid,
                in_specs=[
                    pl.BlockSpec((tm, d_pad), lambda i: (i, 0)),        # x rows
                    resident_spec((d_pad, h_pad), single_buffer_weights),  # W_down^T
                    resident_spec((1, h_pad), single_buffer_weights),      # b_down
                    resident_spec((h_pad, d_pad), single_buffer_weights),  # W_up^T
                    resident_spec((1, d_pad), single_buffer_weights),      # b_up
                    resident_spec((1, d_pad), single_buffer_weights),      # ln gamma
                    resident_spec((1, d_pad), single_buffer_weights),      # ln beta
                ],
                out_specs=pl.BlockSpec((tm, d_pad), lambda i: (i, 0)),
            ),
            compiler_params=pltpu.CompilerParams(
                dimension_semantics=("parallel",),
                vmem_limit_bytes=vmem_limit),
        )(x_p, wd_p, bd_p, wu_p, bu_p, g_p, b_p)

    try:
        out = run(True)
    except Exception:
        # Fallback for JAX versions that reject pipeline_mode=pl.Buffered(1)
        # on top-level pallas_call in_specs.
        out = run(False)

    if d_pad != orig_dim:
        out = out[:, :orig_dim]
    return out.reshape(orig_shape)


def init_adapter_params(key, orig_dim, down_dim, dtype=jnp.float32):
    """Deterministic init mirroring the module: xavier_uniform_ for both
    projection weights, zeros for biases, LayerNorm gamma=1 / beta=0."""
    k1, k2 = jax.random.split(key)

    def xavier_uniform(k, fan_out, fan_in):
        bound = math.sqrt(6.0 / (fan_in + fan_out))
        # PyTorch Linear weight shape is (out, in); store transposed (in, out).
        w = jax.random.uniform(k, (fan_out, fan_in), dtype=jnp.float32,
                               minval=-bound, maxval=bound)
        return w.T.astype(dtype)

    return {
        "w_down_t": xavier_uniform(k1, down_dim, orig_dim),   # (orig, down)
        "b_down": jnp.zeros((1, down_dim), dtype),
        "w_up_t": xavier_uniform(k2, orig_dim, down_dim),     # (down, orig)
        "b_up": jnp.zeros((1, orig_dim), dtype),
        "ln_gamma": jnp.ones((1, orig_dim), dtype),
        "ln_beta": jnp.zeros((1, orig_dim), dtype),
    }


def _reference(x, params, layer_norm_opt):
    """Pure-JAX reference (f32, highest matmul precision)."""
    x = x.astype(jnp.float32)
    hi = lax.Precision.HIGHEST
    if layer_norm_opt == "first":
        x = _layernorm(x, params["ln_gamma"].astype(jnp.float32),
                       params["ln_beta"].astype(jnp.float32), x.shape[-1])
    h = jnp.dot(x, params["w_down_t"].astype(jnp.float32), precision=hi)
    h = h + params["b_down"].astype(jnp.float32)
    h = _gelu(h, False)
    y = jnp.dot(h, params["w_up_t"].astype(jnp.float32), precision=hi)
    y = y + params["b_up"].astype(jnp.float32)
    if layer_norm_opt == "last":
        y = _layernorm(y, params["ln_gamma"].astype(jnp.float32),
                       params["ln_beta"].astype(jnp.float32), y.shape[-1])
    return y


if __name__ == "__main__":
    key = jax.random.PRNGKey(0)
    k_x, k_p, k_x2, k_p2 = jax.random.split(key, 4)

    ok = True

    def check(out, ref, atol, rtol):
        global ok
        out = jax.block_until_ready(out)
        if not jnp.allclose(out.astype(jnp.float32), ref, atol=atol, rtol=rtol):
            ok = False

    # 1) Small non-128-aligned dims (lane-padded path), all LayerNorm options.
    batch, seq, orig_dim, down_dim = 2, 8, 32, 16
    x = jax.random.normal(k_x, (batch, seq, orig_dim), dtype=jnp.float32)
    params = init_adapter_params(k_p, orig_dim, down_dim)
    for ln_opt in (None, "first", "last"):
        out = adapter_forward(x, params, layer_norm_opt=ln_opt)
        ref = _reference(x.reshape(-1, orig_dim), params, ln_opt).reshape(x.shape)
        check(out, ref, 5e-3, 5e-3)

    # 2) Partial last row block (M=14 not a multiple of tm=8): exercises the
    #    cdiv grid + OOB-masked writes path.
    x_odd = jax.random.normal(k_x2, (2, 7, orig_dim), dtype=jnp.float32)
    out = adapter_forward(x_odd, params, layer_norm_opt="first", tm=8)
    ref = _reference(x_odd.reshape(-1, orig_dim), params, "first").reshape(x_odd.shape)
    check(out, ref, 5e-3, 5e-3)

    # 3) 128-aligned dims: no padding, no slicing (pure kernel path).
    orig_a, down_a = 128, 128
    x_a = jax.random.normal(k_x2, (2, 8, orig_a), dtype=jnp.float32)
    params_a = init_adapter_params(k_p2, orig_a, down_a)
    out = adapter_forward(x_a, params_a, layer_norm_opt="last")
    ref = _reference(x_a.reshape(-1, orig_a), params_a, "last").reshape(x_a.shape)
    check(out, ref, 5e-3, 5e-3)

    # 4) bf16 path: native-dtype MXU matmuls with f32 accumulation.
    x_bf = x.astype(jnp.bfloat16)
    params_bf = jax.tree_util.tree_map(lambda a: a.astype(jnp.bfloat16), params)
    out = adapter_forward(x_bf, params_bf, layer_norm_opt="first")
    ref = _reference(x_bf.reshape(-1, orig_dim), params_bf, "first").reshape(x.shape)
    check(out, ref, 8e-2, 8e-2)

    if ok:
        print("KERNEL_OK")
</pallas_src>

<mosaic_0001>
module attributes {stable_mosaic.version = 11 : i64} {
  func.func @_adapter_kernel(%arg0: i32, %arg1: memref<16x128xf32, #tpu.memory_space<vmem>>, %arg2: memref<128x128xf32, #tpu.memory_space<vmem>>, %arg3: memref<1x128xf32, #tpu.memory_space<vmem>>, %arg4: memref<128x128xf32, #tpu.memory_space<vmem>>, %arg5: memref<1x128xf32, #tpu.memory_space<vmem>>, %arg6: memref<1x128xf32, #tpu.memory_space<vmem>>, %arg7: memref<1x128xf32, #tpu.memory_space<vmem>>, %arg8: memref<16x128xf32, #tpu.memory_space<vmem>>) attributes {dimension_semantics = [#tpu.dimension_semantics<parallel>], iteration_bounds = array<i64: 1>, scalar_prefetch = 0 : i64, scratch_operands = 0 : i64, tpu.core_type = #tpu.core_type<tc>, window_params = [{transform_indices = @transform_0, window_bounds = array<i64: 16, 128>}, {pipeline_mode = #tpu.pipeline_mode<synchronous>, transform_indices = @transform_1, window_bounds = array<i64: 128, 128>}, {pipeline_mode = #tpu.pipeline_mode<synchronous>, transform_indices = @transform_2, window_bounds = array<i64: 1, 128>}, {pipeline_mode = #tpu.pipeline_mode<synchronous>, transform_indices = @transform_3, window_bounds = array<i64: 128, 128>}, {pipeline_mode = #tpu.pipeline_mode<synchronous>, transform_indices = @transform_4, window_bounds = array<i64: 1, 128>}, {pipeline_mode = #tpu.pipeline_mode<synchronous>, transform_indices = @transform_5, window_bounds = array<i64: 1, 128>}, {pipeline_mode = #tpu.pipeline_mode<synchronous>, transform_indices = @transform_6, window_bounds = array<i64: 1, 128>}, {transform_indices = @transform_7, window_bounds = array<i64: 16, 128>}]} {
    %c0 = arith.constant 0 : index
    %c0_0 = arith.constant 0 : index
    %0 = vector.load %arg1[%c0, %c0_0] : memref<16x128xf32, #tpu.memory_space<vmem>>, vector<16x128xf32>
    %c0_1 = arith.constant 0 : index
    %c0_2 = arith.constant 0 : index
    %1 = vector.load %arg2[%c0_1, %c0_2] : memref<128x128xf32, #tpu.memory_space<vmem>>, vector<128x128xf32>
    %cst = arith.constant dense<0.000000e+00> : vector<16x128xf32>
    %2 = tpu.matmul %0, %1, %cst {dimension_numbers = #tpu.dot_dimension_numbers<[1], [0], [0], [1], [0, 0, 1, 1], [], []>} : vector<16x128xf32>, vector<128x128xf32>, vector<16x128xf32> -> vector<16x128xf32>
    %c0_3 = arith.constant 0 : index
    %c0_4 = arith.constant 0 : index
    %3 = vector.load %arg3[%c0_3, %c0_4] : memref<1x128xf32, #tpu.memory_space<vmem>>, vector<1x128xf32>
    %4 = vector.broadcast %3 : vector<1x128xf32> to vector<16x128xf32>
    %5 = arith.addf %2, %4 : vector<16x128xf32>
    %cst_5 = arith.constant 5.000000e-01 : f32
    %6 = vector.broadcast %cst_5 : f32 to vector<16x128xf32>
    %7 = arith.mulf %6, %5 : vector<16x128xf32>
    %cst_6 = arith.constant 0.707106769 : f32
    %8 = vector.broadcast %cst_6 : f32 to vector<16x128xf32>
    %9 = arith.mulf %5, %8 : vector<16x128xf32>
    %10 = math.erf %9 : vector<16x128xf32>
    %cst_7 = arith.constant 1.000000e+00 : f32
    %11 = vector.broadcast %cst_7 : f32 to vector<16x128xf32>
    %12 = arith.addf %11, %10 : vector<16x128xf32>
    %13 = arith.mulf %7, %12 : vector<16x128xf32>
    %c0_8 = arith.constant 0 : index
    %c0_9 = arith.constant 0 : index
    %14 = vector.load %arg4[%c0_8, %c0_9] : memref<128x128xf32, #tpu.memory_space<vmem>>, vector<128x128xf32>
    %cst_10 = arith.constant dense<0.000000e+00> : vector<16x128xf32>
    %15 = tpu.matmul %13, %14, %cst_10 {dimension_numbers = #tpu.dot_dimension_numbers<[1], [0], [0], [1], [0, 0, 1, 1], [], []>} : vector<16x128xf32>, vector<128x128xf32>, vector<16x128xf32> -> vector<16x128xf32>
    %c0_11 = arith.constant 0 : index
    %c0_12 = arith.constant 0 : index
    %16 = vector.load %arg5[%c0_11, %c0_12] : memref<1x128xf32, #tpu.memory_space<vmem>>, vector<1x128xf32>
    %17 = vector.broadcast %16 : vector<1x128xf32> to vector<16x128xf32>
    %18 = arith.addf %15, %17 : vector<16x128xf32>
    %c0_13 = arith.constant 0 : index
    %c0_14 = arith.constant 0 : index
    %19 = vector.load %arg8[%c0_13, %c0_14] : memref<16x128xf32, #tpu.memory_space<vmem>>, vector<16x128xf32>
    tpu.vector_store %arg8[%c0_13, %c0_14], %18 {strides = array<i32>} : memref<16x128xf32, #tpu.memory_space<vmem>>, vector<16x128xf32>,
    return
  }
  func.func @transform_0(%arg0: i32) -> (i32, i32) {
    %c0_i32 = arith.constant 0 : i32
    %c0_i32_0 = arith.constant 0 : i32
    return %arg0, %c0_i32 : i32, i32
  }
  func.func @transform_1(%arg0: i32) -> (i32, i32) {
    %c0_i32 = arith.constant 0 : i32
    %c0_i32_0 = arith.constant 0 : i32
    %c0_i32_1 = arith.constant 0 : i32
    return %c0_i32, %c0_i32_0 : i32, i32
  }
  func.func @transform_2(%arg0: i32) -> (i32, i32) {
    %c0_i32 = arith.constant 0 : i32
    %c0_i32_0 = arith.constant 0 : i32
    %c0_i32_1 = arith.constant 0 : i32
    return %c0_i32, %c0_i32_0 : i32, i32
  }
  func.func @transform_3(%arg0: i32) -> (i32, i32) {
    %c0_i32 = arith.constant 0 : i32
    %c0_i32_0 = arith.constant 0 : i32
    %c0_i32_1 = arith.constant 0 : i32
    return %c0_i32, %c0_i32_0 : i32, i32
  }
  func.func @transform_4(%arg0: i32) -> (i32, i32) {
    %c0_i32 = arith.constant 0 : i32
    %c0_i32_0 = arith.constant 0 : i32
    %c0_i32_1 = arith.constant 0 : i32
    return %c0_i32, %c0_i32_0 : i32, i32
  }
  func.func @transform_5(%arg0: i32) -> (i32, i32) {
    %c0_i32 = arith.constant 0 : i32
    %c0_i32_0 = arith.constant 0 : i32
    %c0_i32_1 = arith.constant 0 : i32
    return %c0_i32, %c0_i32_0 : i32, i32
  }
  func.func @transform_6(%arg0: i32) -> (i32, i32) {
    %c0_i32 = arith.constant 0 : i32
    %c0_i32_0 = arith.constant 0 : i32
    %c0_i32_1 = arith.constant 0 : i32
    return %c0_i32, %c0_i32_0 : i32, i32
  }
  func.func @transform_7(%arg0: i32) -> (i32, i32) {
    %c0_i32 = arith.constant 0 : i32
    %c0_i32_0 = arith.constant 0 : i32
    return %arg0, %c0_i32 : i32, i32
  }
}

module attributes {stable_mosaic.version = 11 : i64} {
  func.func @_adapter_kernel(%arg0: i32, %arg1: memref<16x128xf32, #tpu.memory_space<vmem>>, %arg2: memref<128x128xf32, #tpu.memory_space<vmem>>, %arg3: memref<1x128xf32, #tpu.memory_space<vmem>>, %arg4: memref<128x128xf32, #tpu.memory_space<vmem>>, %arg5: memref<1x128xf32, #tpu.memory_space<vmem>>, %arg6: memref<1x128xf32, #tpu.memory_space<vmem>>, %arg7: memref<1x128xf32, #tpu.memory_space<vmem>>, %arg8: memref<16x128xf32, #tpu.memory_space<vmem>>) attributes {dimension_semantics = [#tpu.dimension_semantics<parallel>], iteration_bounds = array<i64: 1>, scalar_prefetch = 0 : i64, scratch_operands = 0 : i64, tpu.core_type = #tpu.core_type<tc>, window_params = [{transform_indices = @transform_0, window_bounds = array<i64: 16, 128>}, {pipeline_mode = #tpu.pipeline_mode<synchronous>, transform_indices = @transform_1, window_bounds = array<i64: 128, 128>}, {pipeline_mode = #tpu.pipeline_mode<synchronous>, transform_indices = @transform_2, window_bounds = array<i64: 1, 128>}, {pipeline_mode = #tpu.pipeline_mode<synchronous>, transform_indices = @transform_3, window_bounds = array<i64: 128, 128>}, {pipeline_mode = #tpu.pipeline_mode<synchronous>, transform_indices = @transform_4, window_bounds = array<i64: 1, 128>}, {pipeline_mode = #tpu.pipeline_mode<synchronous>, transform_indices = @transform_5, window_bounds = array<i64: 1, 128>}, {pipeline_mode = #tpu.pipeline_mode<synchronous>, transform_indices = @transform_6, window_bounds = array<i64: 1, 128>}, {transform_indices = @transform_7, window_bounds = array<i64: 16, 128>}]} {
    %c0 = arith.constant 0 : index
    %c0_0 = arith.constant 0 : index
    %0 = vector.load %arg1[%c0, %c0_0] : memref<16x128xf32, #tpu.memory_space<vmem>>, vector<16x128xf32>
    %c0_1 = arith.constant 0 : index
    %c0_2 = arith.constant 0 : index
    %1 = vector.load %arg2[%c0_1, %c0_2] : memref<128x128xf32, #tpu.memory_space<vmem>>, vector<128x128xf32>
    %cst = arith.constant dense<0.000000e+00> : vector<16x128xf32>
    %2 = tpu.matmul %0, %1, %cst {dimension_numbers = #tpu.dot_dimension_numbers<[1], [0], [0], [1], [0, 0, 1, 1], [], []>} : vector<16x128xf32>, vector<128x128xf32>, vector<16x128xf32> -> vector<16x128xf32>
    %c0_3 = arith.constant 0 : index
    %c0_4 = arith.constant 0 : index
    %3 = vector.load %arg3[%c0_3, %c0_4] : memref<1x128xf32, #tpu.memory_space<vmem>>, vector<1x128xf32>
    %4 = vector.broadcast %3 : vector<1x128xf32> to vector<16x128xf32>
    %5 = arith.addf %2, %4 : vector<16x128xf32>
    %cst_5 = arith.constant 5.000000e-01 : f32
    %6 = vector.broadcast %cst_5 : f32 to vector<16x128xf32>
    %7 = arith.mulf %6, %5 : vector<16x128xf32>
    %cst_6 = arith.constant 0.707106769 : f32
    %8 = vector.broadcast %cst_6 : f32 to vector<16x128xf32>
    %9 = arith.mulf %5, %8 : vector<16x128xf32>
    %10 = math.erf %9 : vector<16x128xf32>
    %cst_7 = arith.constant 1.000000e+00 : f32
    %11 = vector.broadcast %cst_7 : f32 to vector<16x128xf32>
    %12 = arith.addf %11, %10 : vector<16x128xf32>
    %13 = arith.mulf %7, %12 : vector<16x128xf32>
    %c0_8 = arith.constant 0 : index
    %c0_9 = arith.constant 0 : index
    %14 = vector.load %arg4[%c0_8, %c0_9] : memref<128x128xf32, #tpu.memory_space<vmem>>, vector<128x128xf32>
    %cst_10 = arith.constant dense<0.000000e+00> : vector<16x128xf32>
    %15 = tpu.matmul %13, %14, %cst_10 {dimension_numbers = #tpu.dot_dimension_numbers<[1], [0], [0], [1], [0, 0, 1, 1], [], []>} : vector<16x128xf32>, vector<128x128xf32>, vector<16x128xf32> -> vector<16x128xf32>
    %c0_11 = arith.constant 0 : index
    %c0_12 = arith.constant 0 : index
    %16 = vector.load %arg5[%c0_11, %c0_12] : memref<1x128xf32, #tpu.memory_space<vmem>>, vector<1x128xf32>
    %17 = vector.broadcast %16 : vector<1x128xf32> to vector<16x128xf32>
    %18 = arith.addf %15, %17 : vector<16x128xf32>
    %c0_13 = arith.constant 0 : index
    %c0_14 = arith.constant 0 : index
    %19 = vector.load %arg8[%c0_13, %c0_14] : memref<16x128xf32, #tpu.memory_space<vmem>>, vector<16x128xf32>
    tpu.vector_store %arg8[%c0_13, %c0_14], %18 {strides = array<i32>} : memref<16x128xf32, #tpu.memory_space<vmem>>, vector<16x128xf32>,
    return
  }
  func.func @transform_0(%arg0: i32) -> (i32, i32) {
    %c0_i32 = arith.constant 0 : i32
    %c0_i32_0 = arith.constant 0 : i32
    return %arg0, %c0_i32 : i32, i32
  }
  func.func @transform_1(%arg0: i32) -> (i32, i32) {
    %c0_i32 = arith.constant 0 : i32
    %c0_i32_0 = arith.constant 0 : i32
    %c0_i32_1 = arith.constant 0 : i32
    return %c0_i32, %c0_i32_0 : i32, i32
  }
  func.func @transform_2(%arg0: i32) -> (i32, i32) {
    %c0_i32 = arith.constant 0 : i32
    %c0_i32_0 = arith.constant 0 : i32
    %c0_i32_1 = arith.constant 0 : i32
    return %c0_i32, %c0_i32_0 : i32, i32
  }
  func.func @transform_3(%arg0: i32) -> (i32, i32) {
    %c0_i32 = arith.constant 0 : i32
    %c0_i32_0 = arith.constant 0 : i32
    %c0_i32_1 = arith.constant 0 : i32
    return %c0_i32, %c0_i32_0 : i32, i32
  }
  func.func @transform_4(%arg0: i32) -> (i32, i32) {
    %c0_i32 = arith.constant 0 : i32
    %c0_i32_0 = arith.constant 0 : i32
    %c0_i32_1 = arith.constant 0 : i32
    return %c0_i32, %c0_i32_0 : i32, i32
  }
  func.func @transform_5(%arg0: i32) -> (i32, i32) {
    %c0_i32 = arith.constant 0 : i32
    %c0_i32_0 = arith.constant 0 : i32
    %c0_i32_1 = arith.constant 0 : i32
    return %c0_i32, %c0_i32_0 : i32, i32
  }
  func.func @transform_6(%arg0: i32) -> (i32, i32) {
    %c0_i32 = arith.constant 0 : i32
    %c0_i32_0 = arith.constant 0 : i32
    %c0_i32_1 = arith.constant 0 : i32
    return %c0_i32, %c0_i32_0 : i32, i32
  }
  func.func @transform_7(%arg0: i32) -> (i32, i32) {
    %c0_i32 = arith.constant 0 : i32
    %c0_i32_0 = arith.constant 0 : i32
    return %arg0, %c0_i32 : i32, i32
  }
}

</mosaic_0001>

<llo_original>
// kernel: tpu_custom_call.1
$region0: #{tpu_custom_call.1}
  #allocation0 [shape = 'u32[]', space=smem, size = 0x4, offset = 0x4, fixed_abs, tag = 'smem constant byte address 0x4 - core index']
  #allocation1 [shape = 'u32[144,128]{1,0:T(1,128)}', space=vmem, size = 0x12000, scoped, tag = 'internal scratch']
  %s0 = inlined_call_operand.hbm [shape: f32[16,128], index: 0, kind: input, shape index: {}]
  %s1 = inlined_call_operand.hbm [shape: f32[128,128], index: 1, kind: input, shape index: {}]
  %s2 = inlined_call_operand.vmem [shape: f32[1,128], index: 2, kind: input, shape index: {}]
  %s3 = inlined_call_operand.hbm [shape: f32[128,128], index: 3, kind: input, shape index: {}]
  %s4 = inlined_call_operand.vmem [shape: f32[1,128], index: 4, kind: input, shape index: {}]
  %s5 = inlined_call_operand.vmem [shape: f32[1,128], index: 5, kind: input, shape index: {}]
  %s6 = inlined_call_operand.vmem [shape: f32[1,128], index: 6, kind: input, shape index: {}]
  %s7 = inlined_call_operand.hbm [shape: f32[16,128], index: 7, kind: output, shape index: {}]
  %s8 = sld [smem:[#allocation0]]
  $region50: #{tpu_custom_call.1} parent=0
    _
  %s10 = ssub.s32 1, %s8
  %s11 = scalar_select 0, %s10, %s8
  $region1: #{tpu_custom_call.1} parent=0
    #allocation2 [shape = 'u8[8192]{0}', space=vmem, size = 0x2000, scoped, tag = 'input window, operand 0, single buffered']
    #allocation3 [shape = 's32[1]{0}', space=sflag, size = 0x4, scoped, tag = 'scoped memory for tpu_custom_call.1']
    #allocation4 [shape = 's32[1]{0}', space=sflag, size = 0x4, scoped, tag = 'scoped memory for tpu_custom_call.1']
    #allocation5 [shape = 'u8[65536]{0}', space=vmem, size = 0x10000, scoped, tag = 'input window, operand 1, single buffered']
    #allocation6 [shape = 's32[1]{0}', space=sflag, size = 0x4, scoped, tag = 'scoped memory for tpu_custom_call.1']
    #allocation7 [shape = 'u8[65536]{0}', space=vmem, size = 0x10000, scoped, tag = 'input window, operand 3, single buffered']
    #allocation8 [shape = 'u8[8192]{0}', space=vmem, size = 0x2000, scoped, tag = 'output window, operand 0, single buffered']
    %12 = vsyncpa [#allocation3], 0
    %13 = vsyncpa [#allocation6], 0
    %14 = vsyncpa [#allocation4], 0
    // Predicated region
    $region2: #{tpu_custom_call.1} parent=1 // pred_check
      _
    $region3: #{tpu_custom_call.1} parent=1 // pred_check_branch
      %16 = sbr.rel (0) target = $region5
    $region4: #{tpu_custom_call.1} parent=1 // pred_region
      %s18 = ssub.s32 256, 256
      %19 = vsyncadd [#allocation3], %s18
      %s20 = sshll.u32 [#allocation2], 4
      %s21 = int_to_ptr.vmem [resolvable:$true] %s20
      %26 = dma.hbm_to_vmem [thread:$0]  %s0, 256, %s21, [#allocation3], 128, 128, 8
    $region5: #{tpu_custom_call.1} parent=1 // pred_fallthru
      _
    // Predicated region
    $region6: #{tpu_custom_call.1} parent=1 // pred_check
      _
    $region7: #{tpu_custom_call.1} parent=1 // pred_check_branch
      %28 = sbr.rel (0) target = $region9
    $region8: #{tpu_custom_call.1} parent=1 // pred_region
      %s30 = ssub.s32 2048, 2048
      %31 = vsyncadd [#allocation6], %s30
      %s32 = sshll.u32 [#allocation5], 4
      %s33 = int_to_ptr.vmem [resolvable:$true] %s32
      %38 = dma.hbm_to_vmem [thread:$0]  %s1, 2048, %s33, [#allocation6], 128, 128, 8
    $region9: #{tpu_custom_call.1} parent=1 // pred_fallthru
      _
    // Predicated region
    $region10: #{tpu_custom_call.1} parent=1 // pred_check
      _
    $region11: #{tpu_custom_call.1} parent=1 // pred_check_branch
      %40 = sbr.rel (0) target = $region13
    $region12: #{tpu_custom_call.1} parent=1 // pred_region
      _
    $region13: #{tpu_custom_call.1} parent=1 // pred_fallthru
      _
    // Predicated region
    $region14: #{tpu_custom_call.1} parent=1 // pred_check
      _
    $region15: #{tpu_custom_call.1} parent=1 // pred_check_branch
      %42 = sbr.rel (0) target = $region17
    $region16: #{tpu_custom_call.1} parent=1 // pred_region
      %s44 = ssub.s32 2048, 2048
      %45 = vsyncadd [#allocation6], %s44
      %s46 = sshll.u32 [#allocation7], 4
      %s47 = int_to_ptr.vmem [resolvable:$true] %s46
      %52 = dma.hbm_to_vmem [thread:$0]  %s3, 2048, %s47, [#allocation6], 128, 128, 8
    $region17: #{tpu_custom_call.1} parent=1 // pred_fallthru
      _
    // Predicated region
    $region18: #{tpu_custom_call.1} parent=1 // pred_check
      _
    $region19: #{tpu_custom_call.1} parent=1 // pred_check_branch
      %54 = sbr.rel (0) target = $region21
    $region20: #{tpu_custom_call.1} parent=1 // pred_region
      _
    $region21: #{tpu_custom_call.1} parent=1 // pred_fallthru
      _
    // Predicated region
    $region22: #{tpu_custom_call.1} parent=1 // pred_check
      _
    $region23: #{tpu_custom_call.1} parent=1 // pred_check_branch
      %56 = sbr.rel (0) target = $region25
    $region24: #{tpu_custom_call.1} parent=1 // pred_region
      _
    $region25: #{tpu_custom_call.1} parent=1 // pred_fallthru
      _
    // Predicated region
    $region26: #{tpu_custom_call.1} parent=1 // pred_check
      _
    $region27: #{tpu_custom_call.1} parent=1 // pred_check_branch
      %58 = sbr.rel (0) target = $region29
    $region28: #{tpu_custom_call.1} parent=1 // pred_region
      _
    $region29: #{tpu_custom_call.1} parent=1 // pred_fallthru
      _
    // Predicated region
    $region30: #{tpu_custom_call.1} parent=1 // pred_check
      _
    $region31: #{tpu_custom_call.1} parent=1 // pred_check_branch
      %60 = sbr.rel (0) target = $region33
    $region32: #{tpu_custom_call.1} parent=1 // pred_region
      %61 = dma.done [#allocation3], 256
    $region33: #{tpu_custom_call.1} parent=1 // pred_fallthru
      _
    // Predicated region
    $region34: #{tpu_custom_call.1} parent=1 // pred_check
      _
    $region35: #{tpu_custom_call.1} parent=1 // pred_check_branch
      %63 = sbr.rel (0) target = $region37
    $region36: #{tpu_custom_call.1} parent=1 // pred_region
      %64 = dma.done [#allocation6], 2048
    $region37: #{tpu_custom_call.1} parent=1 // pred_fallthru
      _
    // Predicated region
    $region38: #{tpu_custom_call.1} parent=1 // pred_check
      _
    $region39: #{tpu_custom_call.1} parent=1 // pred_check_branch
      %66 = sbr.rel (0) target = $region41
    $region40: #{tpu_custom_call.1} parent=1 // pred_region
      %67 = dma.done [#allocation6], 2048
    $region41: #{tpu_custom_call.1} parent=1 // pred_fallthru
      _
    %v68 = vld [vmem:[#allocation2] sm:$0xff]
    %v69 = vld [vmem:[#allocation2 + $0x8] sm:$0xff]
    %v70 = vld [vmem:[#allocation5] sm:$0xff]
    %v71 = vld [vmem:[#allocation5 + $0x8] sm:$0xff]
    %v72 = vld [vmem:[#allocation5 + $0x10] sm:$0xff]
    %v73 = vld [vmem:[#allocation5 + $0x18] sm:$0xff]
    %v74 = vld [vmem:[#allocation5 + $0x20] sm:$0xff]
    %v75 = vld [vmem:[#allocation5 + $0x28] sm:$0xff]
    %v76 = vld [vmem:[#allocation5 + $0x30] sm:$0xff]
    %v77 = vld [vmem:[#allocation5 + $0x38] sm:$0xff]
    %v78 = vld [vmem:[#allocation5 + $0x40] sm:$0xff]
    %v79 = vld [vmem:[#allocation5 + $0x48] sm:$0xff]
    %v80 = vld [vmem:[#allocation5 + $0x50] sm:$0xff]
    %v81 = vld [vmem:[#allocation5 + $0x58] sm:$0xff]
    %v82 = vld [vmem:[#allocation5 + $0x60] sm:$0xff]
    %v83 = vld [vmem:[#allocation5 + $0x68] sm:$0xff]
    %v84 = vld [vmem:[#allocation5 + $0x70] sm:$0xff]
    %v85 = vld [vmem:[#allocation5 + $0x78] sm:$0xff]
    %v86 = vld [vmem:[%s2] sm:$0x1]
    %v88 = vlaneseq
    %v89 = vshrl.u32 %v88, 7
    %v90 = vsub.s32 0, %v89
    %v91 = vrot.slane %v86, %v90
    %93 = vmatprep.subr.mxu0 0.0
    %94 = vmatpush1.msra.mxu0 %v70
    %95 = vmatprep.subr.mxu0 0.0
    %96 = vmatpush1.msra.mxu0 %v71
    %97 = vmatprep.subr.mxu0 0.0
    %98 = vmatpush1.msra.mxu0 %v72
    %99 = vmatprep.subr.mxu0 0.0
    %100 = vmatpush1.msra.mxu0 %v73
    %101 = vmatprep.subr.mxu0 0.0
    %102 = vmatpush1.msra.mxu0 %v74
    %103 = vmatprep.subr.mxu0 0.0
    %104 = vmatpush1.msra.mxu0 %v75
    %105 = vmatprep.subr.mxu0 0.0
    %106 = vmatpush1.msra.mxu0 %v76
    %107 = vmatprep.subr.mxu0 0.0
    %108 = vmatpush1.msra.mxu0 %v77
    %109 = vmatprep.subr.mxu0 0.0
    %110 = vmatpush1.msra.mxu0 %v78
    %111 = vmatprep.subr.mxu0 0.0
    %112 = vmatpush1.msra.mxu0 %v79
    %113 = vmatprep.subr.mxu0 0.0
    %114 = vmatpush1.msra.mxu0 %v80
    %115 = vmatprep.subr.mxu0 0.0
    %116 = vmatpush1.msra.mxu0 %v81
    %117 = vmatprep.subr.mxu0 0.0
    %118 = vmatpush1.msra.mxu0 %v82
    %119 = vmatprep.subr.mxu0 0.0
    %120 = vmatpush1.msra.mxu0 %v83
    %121 = vmatprep.subr.mxu0 0.0
    %122 = vmatpush1.msra.mxu0 %v84
    %123 = vmatprep.subr.mxu0 0.0
    %124 = vmatpush1.msra.mxu0 %v85
    %125 = vmatprep.subr.mxu0 0.0
    %126 = vmatpush1.msra.mxu0 0.0
    %127 = vmatprep.subr.mxu0 0.0
    %128 = vmatpush1.msra.mxu0 0.0
    %129 = vmatprep.subr.mxu0 0.0
    %130 = vmatpush1.msra.mxu0 0.0
    %131 = vmatprep.subr.mxu0 0.0
    %132 = vmatpush1.msra.mxu0 0.0
    %133 = vmatprep.subr.mxu0 0.0
    %134 = vmatpush1.msra.mxu0 0.0
    %135 = vmatprep.subr.mxu0 0.0
    %136 = vmatpush1.msra.mxu0 0.0
    %137 = vmatprep.subr.mxu0 0.0
    %138 = vmatpush1.msra.mxu0 0.0
    %139 = vmatprep.subr.mxu0 0.0
    %140 = vmatpush1.msra.mxu0 0.0
    %141 = vmatprep.subr.mxu0 0.0
    %142 = vmatpush1.msra.mxu0 0.0
    %143 = vmatprep.subr.mxu0 0.0
    %144 = vmatpush1.msra.mxu0 0.0
    %145 = vmatprep.subr.mxu0 0.0
    %146 = vmatpush1.msra.mxu0 0.0
    %147 = vmatprep.subr.mxu0 0.0
    %148 = vmatpush1.msra.mxu0 0.0
    %149 = vmatprep.subr.mxu0 0.0
    %150 = vmatpush1.msra.mxu0 0.0
    %151 = vmatprep.subr.mxu0 0.0
    %152 = vmatpush1.msra.mxu0 0.0
    %153 = vmatprep.subr.mxu0 0.0
    %154 = vmatpush1.msra.mxu0 0.0
    %155 = vmatprep.subr.mxu0 0.0
    %156 = vmatpush1.msra.mxu0 0.0
    %157 = vmatprep.mubr.f32.mxu0 0.0
    %158 = vmatmul.mubr.f32.gmra.mrb[0].mxu0 %v68
    %v159 = vpop.f32.mrb[0].mxu0
    %v160 = vadd.f32 %v91, %v159
    %v161 = vpop.f32.mrb[0].mxu0
    %162 = vmatprep.mubr.f32.mxu0 0.0
    %163 = vmatmul.mubr.f32.gmra.mrb[0].mxu0 %v69
    %v164 = vpop.f32.mrb[0].mxu0
    %v165 = vadd.f32 %v91, %v164
    %v166 = vpop.f32.mrb[0].mxu0
    %167 = vdwg.mxu0
    %v168 = vmul.f32 %v160, 0.5
    %v169 = vmul.f32 %v165, 0.5
    %v170 = vmul.f32 %v160, 0.70710677
    %v171 = vmul.f32 %v165, 0.70710677
    %v172 = verf.f32.pop %v170
    %v173 = verf.f32.pop %v171
    %v174 = vadd.f32 %v172, 1.0
    %v175 = vadd.f32 %v173, 1.0
    %v176 = vmul.f32 %v168, %v174
    %v177 = vmul.f32 %v169, %v175
    %v178 = vld [vmem:[#allocation7] sm:$0xff]
    %v179 = vld [vmem:[#allocation7 + $0x8] sm:$0xff]
    %v180 = vld [vmem:[#allocation7 + $0x10] sm:$0xff]
    %v181 = vld [vmem:[#allocation7 + $0x18] sm:$0xff]
    %v182 = vld [vmem:[#allocation7 + $0x20] sm:$0xff]
    %v183 = vld [vmem:[#allocation7 + $0x28] sm:$0xff]
    %v184 = vld [vmem:[#allocation7 + $0x30] sm:$0xff]
    %v185 = vld [vmem:[#allocation7 + $0x38] sm:$0xff]
    %v186 = vld [vmem:[#allocation7 + $0x40] sm:$0xff]
    %v187 = vld [vmem:[#allocation7 + $0x48] sm:$0xff]
    %v188 = vld [vmem:[#allocation7 + $0x50] sm:$0xff]
    %v189 = vld [vmem:[#allocation7 + $0x58] sm:$0xff]
    %v190 = vld [vmem:[#allocation7 + $0x60] sm:$0xff]
    %v191 = vld [vmem:[#allocation7 + $0x68] sm:$0xff]
    %v192 = vld [vmem:[#allocation7 + $0x70] sm:$0xff]
    %v193 = vld [vmem:[#allocation7 + $0x78] sm:$0xff]
    %v194 = vld [vmem:[%s4] sm:$0x1]
    %v196 = vlaneseq
    %v197 = vshrl.u32 %v196, 7
    %v198 = vsub.s32 0, %v197
    %v199 = vrot.slane %v194, %v198
    %201 = vmatprep.subr.mxu0 0.0
    %202 = vmatpush1.msra.mxu0 %v178
    %203 = vmatprep.subr.mxu0 0.0
    %204 = vmatpush1.msra.mxu0 %v179
    %205 = vmatprep.subr.mxu0 0.0
    %206 = vmatpush1.msra.mxu0 %v180
    %207 = vmatprep.subr.mxu0 0.0
    %208 = vmatpush1.msra.mxu0 %v181
    %209 = vmatprep.subr.mxu0 0.0
    %210 = vmatpush1.msra.mxu0 %v182
    %211 = vmatprep.subr.mxu0 0.0
    %212 = vmatpush1.msra.mxu0 %v183
    %213 = vmatprep.subr.mxu0 0.0
    %214 = vmatpush1.msra.mxu0 %v184
    %215 = vmatprep.subr.mxu0 0.0
    %216 = vmatpush1.msra.mxu0 %v185
    %217 = vmatprep.subr.mxu0 0.0
    %218 = vmatpush1.msra.mxu0 %v186
    %219 = vmatprep.subr.mxu0 0.0
    %220 = vmatpush1.msra.mxu0 %v187
    %221 = vmatprep.subr.mxu0 0.0
    %222 = vmatpush1.msra.mxu0 %v188
    %223 = vmatprep.subr.mxu0 0.0
    %224 = vmatpush1.msra.mxu0 %v189
    %225 = vmatprep.subr.mxu0 0.0
    %226 = vmatpush1.msra.mxu0 %v190
    %227 = vmatprep.subr.mxu0 0.0
    %228 = vmatpush1.msra.mxu0 %v191
    %229 = vmatprep.subr.mxu0 0.0
    %230 = vmatpush1.msra.mxu0 %v192
    %231 = vmatprep.subr.mxu0 0.0
    %232 = vmatpush1.msra.mxu0 %v193
    %233 = vmatprep.subr.mxu0 0.0
    %234 = vmatpush1.msra.mxu0 0.0
    %235 = vmatprep.subr.mxu0 0.0
    %236 = vmatpush1.msra.mxu0 0.0
    %237 = vmatprep.subr.mxu0 0.0
    %238 = vmatpush1.msra.mxu0 0.0
    %239 = vmatprep.subr.mxu0 0.0
    %240 = vmatpush1.msra.mxu0 0.0
    %241 = vmatprep.subr.mxu0 0.0
    %242 = vmatpush1.msra.mxu0 0.0
    %243 = vmatprep.subr.mxu0 0.0
    %244 = vmatpush1.msra.mxu0 0.0
    %245 = vmatprep.subr.mxu0 0.0
    %246 = vmatpush1.msra.mxu0 0.0
    %247 = vmatprep.subr.mxu0 0.0
    %248 = vmatpush1.msra.mxu0 0.0
    %249 = vmatprep.subr.mxu0 0.0
    %250 = vmatpush1.msra.mxu0 0.0
    %251 = vmatprep.subr.mxu0 0.0
    %252 = vmatpush1.msra.mxu0 0.0
    %253 = vmatprep.subr.mxu0 0.0
    %254 = vmatpush1.msra.mxu0 0.0
    %255 = vmatprep.subr.mxu0 0.0
    %256 = vmatpush1.msra.mxu0 0.0
    %257 = vmatprep.subr.mxu0 0.0
    %258 = vmatpush1.msra.mxu0 0.0
    %259 = vmatprep.subr.mxu0 0.0
    %260 = vmatpush1.msra.mxu0 0.0
    %261 = vmatprep.subr.mxu0 0.0
    %262 = vmatpush1.msra.mxu0 0.0
    %263 = vmatprep.subr.mxu0 0.0
    %264 = vmatpush1.msra.mxu0 0.0
    %265 = vmatprep.mubr.f32.mxu0 0.0
    %266 = vmatmul.mubr.f32.gmra.mrb[0].mxu0 %v176
    %v267 = vpop.f32.mrb[0].mxu0
    %v268 = vadd.f32 %v199, %v267
    %v269 = vpop.f32.mrb[0].mxu0
    %270 = vmatprep.mubr.f32.mxu0 0.0
    %271 = vmatmul.mubr.f32.gmra.mrb[0].mxu0 %v177
    %v272 = vpop.f32.mrb[0].mxu0
    %v273 = vadd.f32 %v199, %v272
    %v274 = vpop.f32.mrb[0].mxu0
    %275 = vdwg.mxu0
    %276 = vst [vmem:[#allocation8] sm:$0xff] %v268
    %277 = vst [vmem:[#allocation8 + $0x8] sm:$0xff] %v273
    // Predicated region
    $region42: #{tpu_custom_call.1} parent=1 // pred_check
      _
    $region43: #{tpu_custom_call.1} parent=1 // pred_check_branch
      %279 = sbr.rel (0) target = $region45
    $region44: #{tpu_custom_call.1} parent=1 // pred_region
      %s281 = ssub.s32 256, 256
      %282 = vsyncadd [#allocation4], %s281
      %s283 = sshll.u32 [#allocation8], 4
      %s284 = int_to_ptr.vmem [resolvable:$true] %s283
      %289 = dma.vmem_to_hbm [thread:$0]  %s284, 256, %s7, [#allocation4], 128, 128, 8
    $region45: #{tpu_custom_call.1} parent=1 // pred_fallthru
      _
    // Predicated region
    $region46: #{tpu_custom_call.1} parent=1 // pred_check
      _
    $region47: #{tpu_custom_call.1} parent=1 // pred_check_branch
      %291 = sbr.rel (0) target = $region49
    $region48: #{tpu_custom_call.1} parent=1 // pred_region
      %292 = dma.done [#allocation4], 256
    $region49: #{tpu_custom_call.1} parent=1 // pred_fallthru
      _
    %293 = vsyncpa [#allocation3], 1
    %294 = vsyncpa [#allocation6], 1
    %295 = vsyncpa [#allocation4], 1

// kernel: tpu_custom_call.1
$region0: #{tpu_custom_call.1}
  #allocation0 [shape = 'u32[]', space=smem, size = 0x4, offset = 0x4, fixed_abs, tag = 'smem constant byte address 0x4 - core index']
  #allocation1 [shape = 'u32[144,128]{1,0:T(1,128)}', space=vmem, size = 0x12000, scoped, tag = 'internal scratch']
  %s0 = inlined_call_operand.hbm [shape: f32[16,128], index: 0, kind: input, shape index: {}]
  %s1 = inlined_call_operand.hbm [shape: f32[128,128], index: 1, kind: input, shape index: {}]
  %s2 = inlined_call_operand.vmem [shape: f32[1,128], index: 2, kind: input, shape index: {}]
  %s3 = inlined_call_operand.hbm [shape: f32[128,128], index: 3, kind: input, shape index: {}]
  %s4 = inlined_call_operand.vmem [shape: f32[1,128], index: 4, kind: input, shape index: {}]
  %s5 = inlined_call_operand.vmem [shape: f32[1,128], index: 5, kind: input, shape index: {}]
  %s6 = inlined_call_operand.vmem [shape: f32[1,128], index: 6, kind: input, shape index: {}]
  %s7 = inlined_call_operand.hbm [shape: f32[16,128], index: 7, kind: output, shape index: {}]
  %s8 = sld [smem:[#allocation0]]
  $region50: #{tpu_custom_call.1} parent=0
    _
  %s10 = ssub.s32 1, %s8
  %s11 = scalar_select 0, %s10, %s8
  $region1: #{tpu_custom_call.1} parent=0
    #allocation2 [shape = 'u8[8192]{0}', space=vmem, size = 0x2000, scoped, tag = 'input window, operand 0, single buffered']
    #allocation3 [shape = 's32[1]{0}', space=sflag, size = 0x4, scoped, tag = 'scoped memory for tpu_custom_call.1']
    #allocation4 [shape = 's32[1]{0}', space=sflag, size = 0x4, scoped, tag = 'scoped memory for tpu_custom_call.1']
    #allocation5 [shape = 'u8[65536]{0}', space=vmem, size = 0x10000, scoped, tag = 'input window, operand 1, single buffered']
    #allocation6 [shape = 's32[1]{0}', space=sflag, size = 0x4, scoped, tag = 'scoped memory for tpu_custom_call.1']
    #allocation7 [shape = 'u8[65536]{0}', space=vmem, size = 0x10000, scoped, tag = 'input window, operand 3, single buffered']
    #allocation8 [shape = 'u8[8192]{0}', space=vmem, size = 0x2000, scoped, tag = 'output window, operand 0, single buffered']
    %12 = vsyncpa [#allocation3], 0
    %13 = vsyncpa [#allocation6], 0
    %14 = vsyncpa [#allocation4], 0
    // Predicated region
    $region2: #{tpu_custom_call.1} parent=1 // pred_check
      _
    $region3: #{tpu_custom_call.1} parent=1 // pred_check_branch
      %16 = sbr.rel (0) target = $region5
    $region4: #{tpu_custom_call.1} parent=1 // pred_region
      %s18 = ssub.s32 256, 256
      %19 = vsyncadd [#allocation3], %s18
      %s20 = sshll.u32 [#allocation2], 4
      %s21 = int_to_ptr.vmem [resolvable:$true] %s20
      %26 = dma.hbm_to_vmem [thread:$0]  %s0, 256, %s21, [#allocation3], 128, 128, 8
    $region5: #{tpu_custom_call.1} parent=1 // pred_fallthru
      _
    // Predicated region
    $region6: #{tpu_custom_call.1} parent=1 // pred_check
      _
    $region7: #{tpu_custom_call.1} parent=1 // pred_check_branch
      %28 = sbr.rel (0) target = $region9
    $region8: #{tpu_custom_call.1} parent=1 // pred_region
      %s30 = ssub.s32 2048, 2048
      %31 = vsyncadd [#allocation6], %s30
      %s32 = sshll.u32 [#allocation5], 4
      %s33 = int_to_ptr.vmem [resolvable:$true] %s32
      %38 = dma.hbm_to_vmem [thread:$0]  %s1, 2048, %s33, [#allocation6], 128, 128, 8
    $region9: #{tpu_custom_call.1} parent=1 // pred_fallthru
      _
    // Predicated region
    $region10: #{tpu_custom_call.1} parent=1 // pred_check
      _
    $region11: #{tpu_custom_call.1} parent=1 // pred_check_branch
      %40 = sbr.rel (0) target = $region13
    $region12: #{tpu_custom_call.1} parent=1 // pred_region
      _
    $region13: #{tpu_custom_call.1} parent=1 // pred_fallthru
      _
    // Predicated region
    $region14: #{tpu_custom_call.1} parent=1 // pred_check
      _
    $region15: #{tpu_custom_call.1} parent=1 // pred_check_branch
      %42 = sbr.rel (0) target = $region17
    $region16: #{tpu_custom_call.1} parent=1 // pred_region
      %s44 = ssub.s32 2048, 2048
      %45 = vsyncadd [#allocation6], %s44
      %s46 = sshll.u32 [#allocation7], 4
      %s47 = int_to_ptr.vmem [resolvable:$true] %s46
      %52 = dma.hbm_to_vmem [thread:$0]  %s3, 2048, %s47, [#allocation6], 128, 128, 8
    $region17: #{tpu_custom_call.1} parent=1 // pred_fallthru
      _
    // Predicated region
    $region18: #{tpu_custom_call.1} parent=1 // pred_check
      _
    $region19: #{tpu_custom_call.1} parent=1 // pred_check_branch
      %54 = sbr.rel (0) target = $region21
    $region20: #{tpu_custom_call.1} parent=1 // pred_region
      _
    $region21: #{tpu_custom_call.1} parent=1 // pred_fallthru
      _
    // Predicated region
    $region22: #{tpu_custom_call.1} parent=1 // pred_check
      _
    $region23: #{tpu_custom_call.1} parent=1 // pred_check_branch
      %56 = sbr.rel (0) target = $region25
    $region24: #{tpu_custom_call.1} parent=1 // pred_region
      _
    $region25: #{tpu_custom_call.1} parent=1 // pred_fallthru
      _
    // Predicated region
    $region26: #{tpu_custom_call.1} parent=1 // pred_check
      _
    $region27: #{tpu_custom_call.1} parent=1 // pred_check_branch
      %58 = sbr.rel (0) target = $region29
    $region28: #{tpu_custom_call.1} parent=1 // pred_region
      _
    $region29: #{tpu_custom_call.1} parent=1 // pred_fallthru
      _
    // Predicated region
    $region30: #{tpu_custom_call.1} parent=1 // pred_check
      _
    $region31: #{tpu_custom_call.1} parent=1 // pred_check_branch
      %60 = sbr.rel (0) target = $region33
    $region32: #{tpu_custom_call.1} parent=1 // pred_region
      %61 = dma.done [#allocation3], 256
    $region33: #{tpu_custom_call.1} parent=1 // pred_fallthru
      _
    // Predicated region
    $region34: #{tpu_custom_call.1} parent=1 // pred_check
      _
    $region35: #{tpu_custom_call.1} parent=1 // pred_check_branch
      %63 = sbr.rel (0) target = $region37
    $region36: #{tpu_custom_call.1} parent=1 // pred_region
      %64 = dma.done [#allocation6], 2048
    $region37: #{tpu_custom_call.1} parent=1 // pred_fallthru
      _
    // Predicated region
    $region38: #{tpu_custom_call.1} parent=1 // pred_check
      _
    $region39: #{tpu_custom_call.1} parent=1 // pred_check_branch
      %66 = sbr.rel (0) target = $region41
    $region40: #{tpu_custom_call.1} parent=1 // pred_region
      %67 = dma.done [#allocation6], 2048
    $region41: #{tpu_custom_call.1} parent=1 // pred_fallthru
      _
    %v68 = vld [vmem:[#allocation2] sm:$0xff]
    %v69 = vld [vmem:[#allocation2 + $0x8] sm:$0xff]
    %v70 = vld [vmem:[#allocation5] sm:$0xff]
    %v71 = vld [vmem:[#allocation5 + $0x8] sm:$0xff]
    %v72 = vld [vmem:[#allocation5 + $0x10] sm:$0xff]
    %v73 = vld [vmem:[#allocation5 + $0x18] sm:$0xff]
    %v74 = vld [vmem:[#allocation5 + $0x20] sm:$0xff]
    %v75 = vld [vmem:[#allocation5 + $0x28] sm:$0xff]
    %v76 = vld [vmem:[#allocation5 + $0x30] sm:$0xff]
    %v77 = vld [vmem:[#allocation5 + $0x38] sm:$0xff]
    %v78 = vld [vmem:[#allocation5 + $0x40] sm:$0xff]
    %v79 = vld [vmem:[#allocation5 + $0x48] sm:$0xff]
    %v80 = vld [vmem:[#allocation5 + $0x50] sm:$0xff]
    %v81 = vld [vmem:[#allocation5 + $0x58] sm:$0xff]
    %v82 = vld [vmem:[#allocation5 + $0x60] sm:$0xff]
    %v83 = vld [vmem:[#allocation5 + $0x68] sm:$0xff]
    %v84 = vld [vmem:[#allocation5 + $0x70] sm:$0xff]
    %v85 = vld [vmem:[#allocation5 + $0x78] sm:$0xff]
    %v86 = vld [vmem:[%s2] sm:$0x1]
    %v88 = vlaneseq
    %v89 = vshrl.u32 %v88, 7
    %v90 = vsub.s32 0, %v89
    %v91 = vrot.slane %v86, %v90
    %93 = vmatprep.subr.mxu0 0.0
    %94 = vmatpush1.msra.mxu0 %v70
    %95 = vmatprep.subr.mxu0 0.0
    %96 = vmatpush1.msra.mxu0 %v71
    %97 = vmatprep.subr.mxu0 0.0
    %98 = vmatpush1.msra.mxu0 %v72
    %99 = vmatprep.subr.mxu0 0.0
    %100 = vmatpush1.msra.mxu0 %v73
    %101 = vmatprep.subr.mxu0 0.0
    %102 = vmatpush1.msra.mxu0 %v74
    %103 = vmatprep.subr.mxu0 0.0
    %104 = vmatpush1.msra.mxu0 %v75
    %105 = vmatprep.subr.mxu0 0.0
    %106 = vmatpush1.msra.mxu0 %v76
    %107 = vmatprep.subr.mxu0 0.0
    %108 = vmatpush1.msra.mxu0 %v77
    %109 = vmatprep.subr.mxu0 0.0
    %110 = vmatpush1.msra.mxu0 %v78
    %111 = vmatprep.subr.mxu0 0.0
    %112 = vmatpush1.msra.mxu0 %v79
    %113 = vmatprep.subr.mxu0 0.0
    %114 = vmatpush1.msra.mxu0 %v80
    %115 = vmatprep.subr.mxu0 0.0
    %116 = vmatpush1.msra.mxu0 %v81
    %117 = vmatprep.subr.mxu0 0.0
    %118 = vmatpush1.msra.mxu0 %v82
    %119 = vmatprep.subr.mxu0 0.0
    %120 = vmatpush1.msra.mxu0 %v83
    %121 = vmatprep.subr.mxu0 0.0
    %122 = vmatpush1.msra.mxu0 %v84
    %123 = vmatprep.subr.mxu0 0.0
    %124 = vmatpush1.msra.mxu0 %v85
    %125 = vmatprep.subr.mxu0 0.0
    %126 = vmatpush1.msra.mxu0 0.0
    %127 = vmatprep.subr.mxu0 0.0
    %128 = vmatpush1.msra.mxu0 0.0
    %129 = vmatprep.subr.mxu0 0.0
    %130 = vmatpush1.msra.mxu0 0.0
    %131 = vmatprep.subr.mxu0 0.0
    %132 = vmatpush1.msra.mxu0 0.0
    %133 = vmatprep.subr.mxu0 0.0
    %134 = vmatpush1.msra.mxu0 0.0
    %135 = vmatprep.subr.mxu0 0.0
    %136 = vmatpush1.msra.mxu0 0.0
    %137 = vmatprep.subr.mxu0 0.0
    %138 = vmatpush1.msra.mxu0 0.0
    %139 = vmatprep.subr.mxu0 0.0
    %140 = vmatpush1.msra.mxu0 0.0
    %141 = vmatprep.subr.mxu0 0.0
    %142 = vmatpush1.msra.mxu0 0.0
    %143 = vmatprep.subr.mxu0 0.0
    %144 = vmatpush1.msra.mxu0 0.0
    %145 = vmatprep.subr.mxu0 0.0
    %146 = vmatpush1.msra.mxu0 0.0
    %147 = vmatprep.subr.mxu0 0.0
    %148 = vmatpush1.msra.mxu0 0.0
    %149 = vmatprep.subr.mxu0 0.0
    %150 = vmatpush1.msra.mxu0 0.0
    %151 = vmatprep.subr.mxu0 0.0
    %152 = vmatpush1.msra.mxu0 0.0
    %153 = vmatprep.subr.mxu0 0.0
    %154 = vmatpush1.msra.mxu0 0.0
    %155 = vmatprep.subr.mxu0 0.0
    %156 = vmatpush1.msra.mxu0 0.0
    %157 = vmatprep.mubr.f32.mxu0 0.0
    %158 = vmatmul.mubr.f32.gmra.mrb[0].mxu0 %v68
    %v159 = vpop.f32.mrb[0].mxu0
    %v160 = vadd.f32 %v91, %v159
    %v161 = vpop.f32.mrb[0].mxu0
    %162 = vmatprep.mubr.f32.mxu0 0.0
    %163 = vmatmul.mubr.f32.gmra.mrb[0].mxu0 %v69
    %v164 = vpop.f32.mrb[0].mxu0
    %v165 = vadd.f32 %v91, %v164
    %v166 = vpop.f32.mrb[0].mxu0
    %167 = vdwg.mxu0
    %v168 = vmul.f32 %v160, 0.5
    %v169 = vmul.f32 %v165, 0.5
    %v170 = vmul.f32 %v160, 0.70710677
    %v171 = vmul.f32 %v165, 0.70710677
    %v172 = verf.f32.pop %v170
    %v173 = verf.f32.pop %v171
    %v174 = vadd.f32 %v172, 1.0
    %v175 = vadd.f32 %v173, 1.0
    %v176 = vmul.f32 %v168, %v174
    %v177 = vmul.f32 %v169, %v175
    %v178 = vld [vmem:[#allocation7] sm:$0xff]
    %v179 = vld [vmem:[#allocation7 + $0x8] sm:$0xff]
    %v180 = vld [vmem:[#allocation7 + $0x10] sm:$0xff]
    %v181 = vld [vmem:[#allocation7 + $0x18] sm:$0xff]
    %v182 = vld [vmem:[#allocation7 + $0x20] sm:$0xff]
    %v183 = vld [vmem:[#allocation7 + $0x28] sm:$0xff]
    %v184 = vld [vmem:[#allocation7 + $0x30] sm:$0xff]
    %v185 = vld [vmem:[#allocation7 + $0x38] sm:$0xff]
    %v186 = vld [vmem:[#allocation7 + $0x40] sm:$0xff]
    %v187 = vld [vmem:[#allocation7 + $0x48] sm:$0xff]
    %v188 = vld [vmem:[#allocation7 + $0x50] sm:$0xff]
    %v189 = vld [vmem:[#allocation7 + $0x58] sm:$0xff]
    %v190 = vld [vmem:[#allocation7 + $0x60] sm:$0xff]
    %v191 = vld [vmem:[#allocation7 + $0x68] sm:$0xff]
    %v192 = vld [vmem:[#allocation7 + $0x70] sm:$0xff]
    %v193 = vld [vmem:[#allocation7 + $0x78] sm:$0xff]
    %v194 = vld [vmem:[%s4] sm:$0x1]
    %v196 = vlaneseq
    %v197 = vshrl.u32 %v196, 7
    %v198 = vsub.s32 0, %v197
    %v199 = vrot.slane %v194, %v198
    %201 = vmatprep.subr.mxu0 0.0
    %202 = vmatpush1.msra.mxu0 %v178
    %203 = vmatprep.subr.mxu0 0.0
    %204 = vmatpush1.msra.mxu0 %v179
    %205 = vmatprep.subr.mxu0 0.0
    %206 = vmatpush1.msra.mxu0 %v180
    %207 = vmatprep.subr.mxu0 0.0
    %208 = vmatpush1.msra.mxu0 %v181
    %209 = vmatprep.subr.mxu0 0.0
    %210 = vmatpush1.msra.mxu0 %v182
    %211 = vmatprep.subr.mxu0 0.0
    %212 = vmatpush1.msra.mxu0 %v183
    %213 = vmatprep.subr.mxu0 0.0
    %214 = vmatpush1.msra.mxu0 %v184
    %215 = vmatprep.subr.mxu0 0.0
    %216 = vmatpush1.msra.mxu0 %v185
    %217 = vmatprep.subr.mxu0 0.0
    %218 = vmatpush1.msra.mxu0 %v186
    %219 = vmatprep.subr.mxu0 0.0
    %220 = vmatpush1.msra.mxu0 %v187
    %221 = vmatprep.subr.mxu0 0.0
    %222 = vmatpush1.msra.mxu0 %v188
    %223 = vmatprep.subr.mxu0 0.0
    %224 = vmatpush1.msra.mxu0 %v189
    %225 = vmatprep.subr.mxu0 0.0
    %226 = vmatpush1.msra.mxu0 %v190
    %227 = vmatprep.subr.mxu0 0.0
    %228 = vmatpush1.msra.mxu0 %v191
    %229 = vmatprep.subr.mxu0 0.0
    %230 = vmatpush1.msra.mxu0 %v192
    %231 = vmatprep.subr.mxu0 0.0
    %232 = vmatpush1.msra.mxu0 %v193
    %233 = vmatprep.subr.mxu0 0.0
    %234 = vmatpush1.msra.mxu0 0.0
    %235 = vmatprep.subr.mxu0 0.0
    %236 = vmatpush1.msra.mxu0 0.0
    %237 = vmatprep.subr.mxu0 0.0
    %238 = vmatpush1.msra.mxu0 0.0
    %239 = vmatprep.subr.mxu0 0.0
    %240 = vmatpush1.msra.mxu0 0.0
    %241 = vmatprep.subr.mxu0 0.0
    %242 = vmatpush1.msra.mxu0 0.0
    %243 = vmatprep.subr.mxu0 0.0
    %244 = vmatpush1.msra.mxu0 0.0
    %245 = vmatprep.subr.mxu0 0.0
    %246 = vmatpush1.msra.mxu0 0.0
    %247 = vmatprep.subr.mxu0 0.0
    %248 = vmatpush1.msra.mxu0 0.0
    %249 = vmatprep.subr.mxu0 0.0
    %250 = vmatpush1.msra.mxu0 0.0
    %251 = vmatprep.subr.mxu0 0.0
    %252 = vmatpush1.msra.mxu0 0.0
    %253 = vmatprep.subr.mxu0 0.0
    %254 = vmatpush1.msra.mxu0 0.0
    %255 = vmatprep.subr.mxu0 0.0
    %256 = vmatpush1.msra.mxu0 0.0
    %257 = vmatprep.subr.mxu0 0.0
    %258 = vmatpush1.msra.mxu0 0.0
    %259 = vmatprep.subr.mxu0 0.0
    %260 = vmatpush1.msra.mxu0 0.0
    %261 = vmatprep.subr.mxu0 0.0
    %262 = vmatpush1.msra.mxu0 0.0
    %263 = vmatprep.subr.mxu0 0.0
    %264 = vmatpush1.msra.mxu0 0.0
    %265 = vmatprep.mubr.f32.mxu0 0.0
    %266 = vmatmul.mubr.f32.gmra.mrb[0].mxu0 %v176
    %v267 = vpop.f32.mrb[0].mxu0
    %v268 = vadd.f32 %v199, %v267
    %v269 = vpop.f32.mrb[0].mxu0
    %270 = vmatprep.mubr.f32.mxu0 0.0
    %271 = vmatmul.mubr.f32.gmra.mrb[0].mxu0 %v177
    %v272 = vpop.f32.mrb[0].mxu0
    %v273 = vadd.f32 %v199, %v272
    %v274 = vpop.f32.mrb[0].mxu0
    %275 = vdwg.mxu0
    %276 = vst [vmem:[#allocation8] sm:$0xff] %v268
    %277 = vst [vmem:[#allocation8 + $0x8] sm:$0xff] %v273
    // Predicated region
    $region42: #{tpu_custom_call.1} parent=1 // pred_check
      _
    $region43: #{tpu_custom_call.1} parent=1 // pred_check_branch
      %279 = sbr.rel (0) target = $region45
    $region44: #{tpu_custom_call.1} parent=1 // pred_region
      %s281 = ssub.s32 256, 256
      %282 = vsyncadd [#allocation4], %s281
      %s283 = sshll.u32 [#allocation8], 4
      %s284 = int_to_ptr.vmem [resolvable:$true] %s283
      %289 = dma.vmem_to_hbm [thread:$0]  %s284, 256, %s7, [#allocation4], 128, 128, 8
    $region45: #{tpu_custom_call.1} parent=1 // pred_fallthru
      _
    // Predicated region
    $region46: #{tpu_custom_call.1} parent=1 // pred_check
      _
    $region47: #{tpu_custom_call.1} parent=1 // pred_check_branch
      %291 = sbr.rel (0) target = $region49
    $region48: #{tpu_custom_call.1} parent=1 // pred_region
      %292 = dma.done [#allocation4], 256
    $region49: #{tpu_custom_call.1} parent=1 // pred_fallthru
      _
    %293 = vsyncpa [#allocation3], 1
    %294 = vsyncpa [#allocation6], 1
    %295 = vsyncpa [#allocation4], 1

</llo_original>
